<compile_context>
chip_gen: v7x
topology: tpu7x:2x2x1
jax: 0.10.0
libtpu: 0.0.40
codegen_flags: <defaults>
</compile_context>

<pallas_src>
from functools import partial

import jax
import jax.numpy as jnp
from jax import lax
from jax.experimental import pallas as pl
from jax.experimental.pallas import tpu as pltpu


# ---------------------------------------------------------------------------
# Generation-aware VMEM budgets
# ---------------------------------------------------------------------------
def _tpu_vmem_bytes():
    try:
        return int(getattr(pltpu.get_tpu_info(), "vmem_capacity_bytes"))
    except Exception:
        return 64 * 1024 * 1024  # conservative default (v7x per-TensorCore VMEM)


_VMEM_BYTES = _tpu_vmem_bytes()
# Per-call double-buffered working-set budget: 1/4 of physical VMEM (32 MiB on v5e/v6e,
# 16 MiB on v7x) leaves headroom for compiler temporaries.
_WS_BUDGET = _VMEM_BYTES // 4
# Per single streamed block budget (used for LayerNorm row tiles).
_BLOCK_BUDGET = max(2 * 1024 * 1024, min(4 * 1024 * 1024, _VMEM_BYTES // 32))
# Raise the scoped-VMEM limit explicitly (defaults: v5e 16 MiB, v6e/v7x 32 MiB).
_VMEM_LIMIT = int(min(0.75 * _VMEM_BYTES, 96 * 1024 * 1024))


def _row_tile(m, row_bytes, budget=None, align=8):
    """Pick a row tile from a VMEM byte budget."""
    budget = _BLOCK_BUDGET if budget is None else budget
    if m * row_bytes <= budget:
        return m
    t = max((budget // max(row_bytes, 1)) // align * align, align)
    return min(t, m)


def _pick_ktile(k, cap=1024):
    """Contraction tile: must divide K exactly; prefer 256-/128-multiples (MXU cadence)."""
    if k <= cap:
        return k
    for gran in (256, 128):
        start = (cap // gran) * gran
        for cand in range(start, gran - 1, -gran):
            if k % cand == 0:
                return cand
    # Guarded fallback for awkward K: largest exact divisor <= cap (never blows the VMEM budget).
    for cand in range(cap, 0, -1):
        if k % cand == 0:
            return cand
    return 1  # unreachable


def _pick_ntile(n, cap, align=128):
    """Tile for the output (lane) dim; block padding of the tail is fine."""
    if n <= cap:
        return n
    return max((cap // align) * align, align)


# ---------------------------------------------------------------------------
# Fused matmul kernel:
#   out = act(x @ w + bias) + residual          (bias / act / residual optional)
#   ln  = LayerNorm(out)                        (optional, full feature width per tile)
# ---------------------------------------------------------------------------
def _make_matmul_kernel(has_bias, activation, has_residual, has_ln, operand_dtype, ln_eps):
    def kernel(*refs):
        idx = 0
        x_ref = refs[idx]; idx += 1
        w_ref = refs[idx]; idx += 1
        b_ref = r_ref = g_ref = beta_ref = None
        if has_bias:
            b_ref = refs[idx]; idx += 1
        if has_residual:
            r_ref = refs[idx]; idx += 1
        if has_ln:
            g_ref = refs[idx]; idx += 1
            beta_ref = refs[idx]; idx += 1
        o_ref = refs[idx]; idx += 1
        ln_ref = None
        if has_ln:
            ln_ref = refs[idx]; idx += 1
        acc_ref = refs[idx]

        @pl.when(pl.program_id(2) == 0)
        def _():
            acc_ref[...] = jnp.zeros_like(acc_ref)

        xt = x_ref[...]
        wt = w_ref[...]
        if operand_dtype is not None:
            # bf16 MXU operands; accumulation stays f32.
            xt = xt.astype(operand_dtype)
            wt = wt.astype(operand_dtype)
        acc_ref[...] += jnp.dot(xt, wt, preferred_element_type=jnp.float32)

        @pl.when(pl.program_id(2) == pl.num_programs(2) - 1)
        def _():
            acc = acc_ref[...]
            if has_bias:
                acc = acc + b_ref[...].astype(jnp.float32)
            if activation == "gelu":
                # exact GELU (erf-based), in f32 on the accumulator tile.
                acc = 0.5 * acc * (1.0 + lax.erf(acc * 0.7071067811865476))
            if has_residual:
                acc = acc + r_ref[...].astype(jnp.float32)
            o_ref[...] = acc.astype(o_ref.dtype)
            if has_ln:
                # norm2 fused into the epilogue.  Padded tail rows may hold garbage; their
                # per-row LN result is discarded by the masked writeback.
                mu = jnp.mean(acc, axis=-1, keepdims=True)
                xc = acc - mu
                var = jnp.mean(xc * xc, axis=-1, keepdims=True)
                y = xc * lax.rsqrt(var + ln_eps)
                y = y * g_ref[...].astype(jnp.float32) + beta_ref[...].astype(jnp.float32)
                ln_ref[...] = y.astype(ln_ref.dtype)

    return kernel


def matmul_fused(x, w, bias=None, residual=None, activation=None, ln_params=None,
                 operand_dtype=jnp.bfloat16):
    """y = activation(x @ w + bias) + residual, fused in one Pallas matmul epilogue.

    If ln_params = (gamma, beta, eps) is given, also returns LayerNorm(y) computed in the same
    epilogue (the output tile then spans the full feature dim)."""
    M, K = x.shape
    K2, N = w.shape
    assert K == K2
    has_ln = ln_params is not None

    tk = _pick_ktile(K)
    n_cap = 1024 if _VMEM_BYTES >= (100 << 20) else 512   # larger N tiles on 128 MiB parts
    tn = N if has_ln else _pick_ntile(N, n_cap)

    # tm from the true double-buffered per-block byte count.
    xb, wb, ob = x.dtype.itemsize, w.dtype.itemsize, x.dtype.itemsize
    fixed = 2 * tk * tn * wb + 4 * tn * 4                  # weight tile (x2) + bias/gamma/beta rows
    per_row = 2 * tk * xb + 2 * tn * ob + tn * 4           # x tile (x2) + out tile (x2) + f32 acc
    if residual is not None:
        per_row += 2 * tn * residual.dtype.itemsize
    if has_ln:
        per_row += 2 * tn * ob                             # second (LN) output tile
    tm_cap = min(max((_WS_BUDGET - fixed) // per_row, 8), 2048)
    tm = M if M <= tm_cap else max((tm_cap // 8) * 8, 8)

    grid = (pl.cdiv(M, tm), pl.cdiv(N, tn), K // tk)

    in_specs = [
        pl.BlockSpec((tm, tk), lambda i, j, k: (i, k)),
        pl.BlockSpec((tk, tn), lambda i, j, k: (k, j)),
    ]
    args = [x, w]
    if bias is not None:
        in_specs.append(pl.BlockSpec((1, tn), lambda i, j, k: (0, j)))
        args.append(bias.reshape(1, N))
    if residual is not None:
        in_specs.append(pl.BlockSpec((tm, tn), lambda i, j, k: (i, j)))
        args.append(residual)
    ln_eps = 0.0
    if has_ln:
        gamma, beta, ln_eps = ln_params
        in_specs.append(pl.BlockSpec((1, tn), lambda i, j, k: (0, j)))
        in_specs.append(pl.BlockSpec((1, tn), lambda i, j, k: (0, j)))
        args.append(gamma.reshape(1, N))
        args.append(beta.reshape(1, N))

    if has_ln:
        out_shape = (jax.ShapeDtypeStruct((M, N), x.dtype),
                     jax.ShapeDtypeStruct((M, N), x.dtype))
        out_specs = (pl.BlockSpec((tm, tn), lambda i, j, k: (i, j)),
                     pl.BlockSpec((tm, tn), lambda i, j, k: (i, j)))
    else:
        out_shape = jax.ShapeDtypeStruct((M, N), x.dtype)
        out_specs = pl.BlockSpec((tm, tn), lambda i, j, k: (i, j))

    kernel = _make_matmul_kernel(bias is not None, activation, residual is not None,
                                 has_ln, operand_dtype, ln_eps)
    return pl.pallas_call(
        kernel,
        out_shape=out_shape,
        grid_spec=pltpu.PrefetchScalarGridSpec(
            num_scalar_prefetch=0,
            grid=grid,
            in_specs=in_specs,
            out_specs=out_specs,
            scratch_shapes=[pltpu.VMEM((tm, tn), jnp.float32)],
        ),
        compiler_params=pltpu.CompilerParams(
            dimension_semantics=("parallel", "parallel", "arbitrary"),
            vmem_limit_bytes=_VMEM_LIMIT,
        ),
    )(*args)


# ---------------------------------------------------------------------------
# LayerNorm kernel (per-row over the feature dim, math in f32) - used only for norm1
# ---------------------------------------------------------------------------
def _layernorm_kernel(x_ref, g_ref, b_ref, o_ref, *, eps):
    x = x_ref[...].astype(jnp.float32)
    mu = jnp.mean(x, axis=-1, keepdims=True)
    xc = x - mu
    var = jnp.mean(xc * xc, axis=-1, keepdims=True)
    inv = lax.rsqrt(var + eps)
    y = xc * inv * g_ref[...].astype(jnp.float32) + b_ref[...].astype(jnp.float32)
    o_ref[...] = y.astype(o_ref.dtype)


def layernorm(x, gamma, beta, eps=1e-5):
    M, C = x.shape
    tm = _row_tile(M, 4 * C * x.dtype.itemsize)   # in + out, double buffered
    grid = (pl.cdiv(M, tm),)
    return pl.pallas_call(
        partial(_layernorm_kernel, eps=eps),
        out_shape=jax.ShapeDtypeStruct((M, C), x.dtype),
        grid_spec=pltpu.PrefetchScalarGridSpec(
            num_scalar_prefetch=0,
            grid=grid,
            in_specs=[
                pl.BlockSpec((tm, C), lambda i: (i, 0)),
                pl.BlockSpec((1, C), lambda i: (0, 0)),
                pl.BlockSpec((1, C), lambda i: (0, 0)),
            ],
            out_specs=pl.BlockSpec((tm, C), lambda i: (i, 0)),
        ),
        compiler_params=pltpu.CompilerParams(
            dimension_semantics=("parallel",),
            vmem_limit_bytes=_VMEM_LIMIT,
        ),
    )(x, gamma.reshape(1, C), beta.reshape(1, C))


# ---------------------------------------------------------------------------
# Attention kernel: reads the (S, 3C) qkv slab of one batch, writes head-merged (S, C).
# All head split/merge is in-register lane slicing; no XLA transposes around the kernel.
# ---------------------------------------------------------------------------
def _attn_kernel(qkv_ref, o_ref, *, dim, num_heads, scale, operand_dtype):
    hd = dim // num_heads
    od = operand_dtype if operand_dtype is not None else jnp.float32
    qkv = qkv_ref[...]                                   # (S, 3C)
    outs = []
    for h in range(num_heads):                           # static unroll over heads
        q = qkv[:, h * hd:(h + 1) * hd].astype(od)                       # (S, hd)
        k = qkv[:, dim + h * hd:dim + (h + 1) * hd].astype(od)           # (S, hd)
        v = qkv[:, 2 * dim + h * hd:2 * dim + (h + 1) * hd].astype(od)   # (S, hd)
        s = lax.dot_general(q, k, (((1,), (1,)), ((), ())),
                            preferred_element_type=jnp.float32) * scale  # (S, S)
        s = s - jnp.max(s, axis=-1, keepdims=True)
        p = jnp.exp(s)
        p = p / jnp.sum(p, axis=-1, keepdims=True)
        outs.append(jnp.dot(p.astype(od), v, preferred_element_type=jnp.float32))
    o_ref[...] = jnp.concatenate(outs, axis=-1).astype(o_ref.dtype)      # (S, C)


def attention_from_qkv(qkv2d, batch, seq, dim, num_heads, scale, out_dtype,
                       operand_dtype=jnp.bfloat16):
    M = batch * seq
    return pl.pallas_call(
        partial(_attn_kernel, dim=dim, num_heads=num_heads, scale=scale,
                operand_dtype=operand_dtype),
        out_shape=jax.ShapeDtypeStruct((M, dim), out_dtype),
        grid_spec=pltpu.PrefetchScalarGridSpec(
            num_scalar_prefetch=0,
            grid=(batch,),
            in_specs=[pl.BlockSpec((seq, 3 * dim), lambda b: (b, 0))],
            out_specs=pl.BlockSpec((seq, dim), lambda b: (b, 0)),
        ),
        compiler_params=pltpu.CompilerParams(
            dimension_semantics=("parallel",),
            vmem_limit_bytes=_VMEM_LIMIT,
        ),
    )(qkv2d)


# ---------------------------------------------------------------------------
# Full Block forward
# ---------------------------------------------------------------------------
def vit_block_forward(x, params, num_heads, eps=1e-5, operand_dtype=jnp.bfloat16):
    B, S, C = x.shape
    hd = C // num_heads
    scale = hd ** (-0.5)
    M = B * S
    x2d = x.reshape(M, C)

    # ---- Attention branch: LN -> qkv matmul -> attention (reads qkv slab) -> proj(+bias,+res) ----
    h = layernorm(x2d, params["norm1_g"], params["norm1_b"], eps=eps)
    qkv2d = matmul_fused(h, params["qkv_w"], bias=params["qkv_b"],
                         operand_dtype=operand_dtype)                    # (M, 3C)
    attn_out = attention_from_qkv(qkv2d, B, S, C, num_heads, scale,
                                  out_dtype=x.dtype, operand_dtype=operand_dtype)  # (M, C)
    # proj with norm2 fused in the epilogue -> (x + attn_proj, LN(x + attn_proj))
    x2d, h2 = matmul_fused(attn_out, params["proj_w"], bias=params["proj_b"], residual=x2d,
                           ln_params=(params["norm2_g"], params["norm2_b"], eps),
                           operand_dtype=operand_dtype)

    # ---- MLP branch: fc1 (+bias, GELU in epilogue) -> fc2 (+bias, +residual) ----
    h2 = matmul_fused(h2, params["fc1_w"], bias=params["fc1_b"], activation="gelu",
                      operand_dtype=operand_dtype)
    x2d = matmul_fused(h2, params["fc2_w"], bias=params["fc2_b"], residual=x2d,
                       operand_dtype=operand_dtype)
    return x2d.reshape(B, S, C)


# ---------------------------------------------------------------------------
# Pure-JAX reference (same math as the PyTorch Block at eval / p=0 dropout)
# ---------------------------------------------------------------------------
def ref_block(x, params, num_heads, eps=1e-5):
    def ln(t, g, b):
        mu = t.mean(-1, keepdims=True)
        var = ((t - mu) ** 2).mean(-1, keepdims=True)
        return (t - mu) / jnp.sqrt(var + eps) * g + b

    B, S, C = x.shape
    hd = C // num_heads
    scale = hd ** (-0.5)

    h = ln(x, params["norm1_g"], params["norm1_b"])
    qkv = h @ params["qkv_w"]
    if params["qkv_b"] is not None:
        qkv = qkv + params["qkv_b"]
    qkv = qkv.reshape(B, S, 3, num_heads, hd).transpose(2, 0, 3, 1, 4)
    q, k, v = qkv[0], qkv[1], qkv[2]
    attn = jnp.einsum("bhqd,bhkd->bhqk", q, k) * scale
    attn = jax.nn.softmax(attn, axis=-1)
    o = jnp.einsum("bhqk,bhkd->bhqd", attn, v)
    o = o.transpose(0, 2, 1, 3).reshape(B, S, C)
    x = x + (o @ params["proj_w"] + params["proj_b"])
    h = ln(x, params["norm2_g"], params["norm2_b"])
    h = jax.nn.gelu(h @ params["fc1_w"] + params["fc1_b"], approximate=False)
    x = x + (h @ params["fc2_w"] + params["fc2_b"])
    return x


if __name__ == "__main__":
    key = jax.random.PRNGKey(0)
    B, S, C = 2, 8, 32            # batch=2, seq=8, dim=32
    num_heads = 4                 # head_dim = 8
    mlp_hidden = int(C * 4.0)     # 128

    keys = jax.random.split(key, 12)
    x = jax.random.normal(keys[0], (B, S, C), dtype=jnp.float32)

    def w(k, shape, scale):
        return scale * jax.random.normal(k, shape, dtype=jnp.float32)

    params = dict(
        norm1_g=1.0 + 0.1 * jax.random.normal(keys[1], (C,), dtype=jnp.float32),
        norm1_b=0.1 * jax.random.normal(keys[2], (C,), dtype=jnp.float32),
        qkv_w=w(keys[3], (C, 3 * C), C ** -0.5),
        qkv_b=None,  # qkv_bias=False (module default)
        proj_w=w(keys[4], (C, C), C ** -0.5),
        proj_b=0.05 * jax.random.normal(keys[5], (C,), dtype=jnp.float32),
        norm2_g=1.0 + 0.1 * jax.random.normal(keys[6], (C,), dtype=jnp.float32),
        norm2_b=0.1 * jax.random.normal(keys[7], (C,), dtype=jnp.float32),
        fc1_w=w(keys[8], (C, mlp_hidden), C ** -0.5),
        fc1_b=0.05 * jax.random.normal(keys[9], (mlp_hidden,), dtype=jnp.float32),
        fc2_w=w(keys[10], (mlp_hidden, C), mlp_hidden ** -0.5),
        fc2_b=0.05 * jax.random.normal(keys[11], (C,), dtype=jnp.float32),
    )

    with jax.default_matmul_precision("highest"):
        ref = ref_block(x, params, num_heads)
    ref = jax.block_until_ready(ref)

    # Exact f32-operand path: matches the module's math to tight tolerance.
    y_exact = jax.block_until_ready(vit_block_forward(x, params, num_heads, operand_dtype=None))
    assert y_exact.shape == x.shape and y_exact.dtype == x.dtype
    assert jnp.allclose(y_exact, ref, atol=1e-3, rtol=1e-3), (
        "f32-operand mismatch vs reference Block: max abs err = "
        + str(float(jnp.max(jnp.abs(y_exact - ref))))
    )

    # Default perf path: bf16 MXU operands with f32 accumulation (looser tolerance).
    y = jax.block_until_ready(vit_block_forward(x, params, num_heads))
    assert y.shape == x.shape and y.dtype == x.dtype
    assert jnp.allclose(y, ref, atol=5e-2, rtol=5e-2), (
        "bf16-operand mismatch vs reference Block: max abs err = "
        + str(float(jnp.max(jnp.abs(y - ref))))
    )

    print("KERNEL_OK")
</pallas_src>

<mosaic_0001>
module attributes {stable_mosaic.version = 11 : i64} {
  func.func @_layernorm_kernel(%arg0: i32, %arg1: memref<16x32xf32, #tpu.memory_space<vmem>>, %arg2: memref<1x32xf32, #tpu.memory_space<vmem>>, %arg3: memref<1x32xf32, #tpu.memory_space<vmem>>, %arg4: memref<16x32xf32, #tpu.memory_space<vmem>>) attributes {dimension_semantics = [#tpu.dimension_semantics<parallel>], iteration_bounds = array<i64: 1>, scalar_prefetch = 0 : i64, scratch_operands = 0 : i64, tpu.core_type = #tpu.core_type<tc>, window_params = [{transform_indices = @transform_0, window_bounds = array<i64: 16, 32>}, {pipeline_mode = #tpu.pipeline_mode<synchronous>, transform_indices = @transform_1, window_bounds = array<i64: 1, 32>}, {pipeline_mode = #tpu.pipeline_mode<synchronous>, transform_indices = @transform_2, window_bounds = array<i64: 1, 32>}, {transform_indices = @transform_3, window_bounds = array<i64: 16, 32>}]} {
    %c0 = arith.constant 0 : index
    %c0_0 = arith.constant 0 : index
    %0 = vector.load %arg1[%c0, %c0_0] : memref<16x32xf32, #tpu.memory_space<vmem>>, vector<16x32xf32>
    %cst = arith.constant dense<0.000000e+00> : vector<16xf32>
    %1 = vector.multi_reduction <add>, %0, %cst [1] : vector<16x32xf32> to vector<16xf32>
    %2 = vector.shape_cast %1 : vector<16xf32> to vector<16x1xf32>
    %cst_1 = arith.constant 3.200000e+01 : f32
    %3 = vector.broadcast %cst_1 : f32 to vector<16x1xf32>
    %4 = arith.divf %2, %3 : vector<16x1xf32>
    %5 = vector.broadcast %4 : vector<16x1xf32> to vector<16x32xf32>
    %6 = arith.subf %0, %5 : vector<16x32xf32>
    %7 = arith.mulf %6, %6 : vector<16x32xf32>
    %cst_2 = arith.constant dense<0.000000e+00> : vector<16xf32>
    %8 = vector.multi_reduction <add>, %7, %cst_2 [1] : vector<16x32xf32> to vector<16xf32>
    %9 = vector.shape_cast %8 : vector<16xf32> to vector<16x1xf32>
    %cst_3 = arith.constant 3.200000e+01 : f32
    %10 = vector.broadcast %cst_3 : f32 to vector<16x1xf32>
    %11 = arith.divf %9, %10 : vector<16x1xf32>
    %cst_4 = arith.constant 9.99999974E-6 : f32
    %12 = vector.broadcast %cst_4 : f32 to vector<16x1xf32>
    %13 = arith.addf %11, %12 : vector<16x1xf32>
    %14 = math.rsqrt %13 : vector<16x1xf32>
    %15 = vector.broadcast %14 : vector<16x1xf32> to vector<16x32xf32>
    %16 = arith.mulf %6, %15 : vector<16x32xf32>
    %c0_5 = arith.constant 0 : index
    %c0_6 = arith.constant 0 : index
    %17 = vector.load %arg2[%c0_5, %c0_6] : memref<1x32xf32, #tpu.memory_space<vmem>>, vector<1x32xf32>
    %18 = vector.broadcast %17 : vector<1x32xf32> to vector<16x32xf32>
    %19 = arith.mulf %16, %18 : vector<16x32xf32>
    %c0_7 = arith.constant 0 : index
    %c0_8 = arith.constant 0 : index
    %20 = vector.load %arg3[%c0_7, %c0_8] : memref<1x32xf32, #tpu.memory_space<vmem>>, vector<1x32xf32>
    %21 = vector.broadcast %20 : vector<1x32xf32> to vector<16x32xf32>
    %22 = arith.addf %19, %21 : vector<16x32xf32>
    %c0_9 = arith.constant 0 : index
    %c0_10 = arith.constant 0 : index
    %23 = vector.load %arg4[%c0_9, %c0_10] : memref<16x32xf32, #tpu.memory_space<vmem>>, vector<16x32xf32>
    tpu.vector_store %arg4[%c0_9, %c0_10], %22 {strides = array<i32>} : memref<16x32xf32, #tpu.memory_space<vmem>>, vector<16x32xf32>,
    return
  }
  func.func @transform_0(%arg0: i32) -> (i32, i32) {
    %c0_i32 = arith.constant 0 : i32
    %c0_i32_0 = arith.constant 0 : i32
    return %arg0, %c0_i32 : i32, i32
  }
  func.func @transform_1(%arg0: i32) -> (i32, i32) {
    %c0_i32 = arith.constant 0 : i32
    %c0_i32_0 = arith.constant 0 : i32
    %c0_i32_1 = arith.constant 0 : i32
    return %c0_i32, %c0_i32_0 : i32, i32
  }
  func.func @transform_2(%arg0: i32) -> (i32, i32) {
    %c0_i32 = arith.constant 0 : i32
    %c0_i32_0 = arith.constant 0 : i32
    %c0_i32_1 = arith.constant 0 : i32
    return %c0_i32, %c0_i32_0 : i32, i32
  }
  func.func @transform_3(%arg0: i32) -> (i32, i32) {
    %c0_i32 = arith.constant 0 : i32
    %c0_i32_0 = arith.constant 0 : i32
    return %arg0, %c0_i32 : i32, i32
  }
}

</mosaic_0001>

<llo_original>
// kernel: tpu_custom_call.1
$region0: #{tpu_custom_call.1}
  #allocation0 [shape = 'u32[]', space=smem, size = 0x4, offset = 0x4, fixed_abs, tag = 'smem constant byte address 0x4 - core index']
  #allocation1 [shape = 'u32[144,128]{1,0:T(1,128)}', space=vmem, size = 0x12000, scoped, tag = 'internal scratch']
  %s0 = inlined_call_operand.hbm [shape: f32[16,32], index: 0, kind: input, shape index: {}]
  %s1 = inlined_call_operand.vmem [shape: f32[1,32], index: 1, kind: input, shape index: {}]
  %s2 = inlined_call_operand.vmem [shape: f32[1,32], index: 2, kind: input, shape index: {}]
  %s3 = inlined_call_operand.hbm [shape: f32[16,32], index: 3, kind: output, shape index: {}]
  %s4 = sld [smem:[#allocation0]]
  $region26: #{tpu_custom_call.1} parent=0
    _
  %s6 = ssub.s32 1, %s4
  %s7 = scalar_select 0, %s6, %s4
  $region1: #{tpu_custom_call.1} parent=0
    #allocation2 [shape = 'u8[8192]{0}', space=vmem, size = 0x2000, scoped, tag = 'input window, operand 0, single buffered']
    #allocation3 [shape = 's32[1]{0}', space=sflag, size = 0x4, scoped, tag = 'scoped memory for tpu_custom_call.1']
    #allocation4 [shape = 's32[1]{0}', space=sflag, size = 0x4, scoped, tag = 'scoped memory for tpu_custom_call.1']
    #allocation5 [shape = 'u8[8192]{0}', space=vmem, size = 0x2000, scoped, tag = 'output window, operand 0, single buffered']
    %8 = vsyncpa [#allocation3], 0
    %9 = vsyncpa [#allocation4], 0
    // Predicated region
    $region2: #{tpu_custom_call.1} parent=1 // pred_check
      _
    $region3: #{tpu_custom_call.1} parent=1 // pred_check_branch
      %11 = sbr.rel (0) target = $region5
    $region4: #{tpu_custom_call.1} parent=1 // pred_region
      %s13 = ssub.s32 256, 256
      %14 = vsyncadd [#allocation3], %s13
      %s15 = sshll.u32 [#allocation2], 4
      %s16 = int_to_ptr.vmem [resolvable:$true] %s15
      %21 = dma.hbm_to_vmem [thread:$0]  %s0, 256, %s16, [#allocation3], 128, 128, 8
    $region5: #{tpu_custom_call.1} parent=1 // pred_fallthru
      _
    // Predicated region
    $region6: #{tpu_custom_call.1} parent=1 // pred_check
      _
    $region7: #{tpu_custom_call.1} parent=1 // pred_check_branch
      %23 = sbr.rel (0) target = $region9
    $region8: #{tpu_custom_call.1} parent=1 // pred_region
      _
    $region9: #{tpu_custom_call.1} parent=1 // pred_fallthru
      _
    // Predicated region
    $region10: #{tpu_custom_call.1} parent=1 // pred_check
      _
    $region11: #{tpu_custom_call.1} parent=1 // pred_check_branch
      %25 = sbr.rel (0) target = $region13
    $region12: #{tpu_custom_call.1} parent=1 // pred_region
      _
    $region13: #{tpu_custom_call.1} parent=1 // pred_fallthru
      _
    // Predicated region
    $region14: #{tpu_custom_call.1} parent=1 // pred_check
      _
    $region15: #{tpu_custom_call.1} parent=1 // pred_check_branch
      %27 = sbr.rel (0) target = $region17
    $region16: #{tpu_custom_call.1} parent=1 // pred_region
      %28 = dma.done [#allocation3], 256
    $region17: #{tpu_custom_call.1} parent=1 // pred_fallthru
      _
    %v29 = vld [vmem:[#allocation2] sm:$0xff]
    %v30 = vld [vmem:[#allocation2 + $0x8] sm:$0xff]
    %vm31 = vcmask 261120
    %v32 = vsel %vm31, %v29, 0.0
    %33 = vadd.xlane.f32.xlu0 %v32
    %v34 = vpop.xlane.xlu0 %33
    %v35 = vsel %vm31, %v30, 0.0
    %36 = vadd.xlane.f32.xlu0 %v35
    %v37 = vpop.xlane.xlu0 %36
    %v38 = vrcp.pop 32.0
    %v39 = vmul.f32 %v34, %v38
    %v40 = vmul.f32 %v37, %v38
    %v41 = vsub.f32 %v29, %v39
    %v42 = vsub.f32 %v30, %v40
    %v43 = vmul.f32 %v41, %v41
    %v44 = vmul.f32 %v42, %v42
    %v45 = vsel %vm31, %v43, 0.0
    %46 = vadd.xlane.f32.xlu0 %v45
    %v47 = vpop.xlane.xlu0 %46
    %v48 = vsel %vm31, %v44, 0.0
    %49 = vadd.xlane.f32.xlu0 %v48
    %v50 = vpop.xlane.xlu0 %49
    %v51 = vmul.f32 %v47, %v38
    %v52 = vmul.f32 %v50, %v38
    %v53 = vadd.f32 %v51, 1e-05
    %v54 = vadd.f32 %v52, 1e-05
    %v55 = vrsqrt.pop %v53
    %v56 = vrsqrt.pop %v54
    %v57 = vmul.f32 %v41, %v55
    %v58 = vmul.f32 %v42, %v56
    %v59 = vld [vmem:[%s1] sm:$0x1]
    %v61 = vlaneseq
    %v62 = vshrl.u32 %v61, 7
    %v63 = vsub.s32 0, %v62
    %v64 = vrot.slane %v59, %v63
    %v66 = vmul.f32 %v57, %v64
    %v67 = vmul.f32 %v58, %v64
    %v68 = vld [vmem:[%s2] sm:$0x1]
    %v70 = vlaneseq
    %v71 = vshrl.u32 %v70, 7
    %v72 = vsub.s32 0, %v71
    %v73 = vrot.slane %v68, %v72
    %v75 = vadd.f32 %v66, %v73
    %v76 = vadd.f32 %v67, %v73
    %77 = vst.msk [vmem:[#allocation5] sm:$0xff] %vm31, %v75
    %78 = vst.msk [vmem:[#allocation5 + $0x8] sm:$0xff] %vm31, %v76
    // Predicated region
    $region18: #{tpu_custom_call.1} parent=1 // pred_check
      _
    $region19: #{tpu_custom_call.1} parent=1 // pred_check_branch
      %80 = sbr.rel (0) target = $region21
    $region20: #{tpu_custom_call.1} parent=1 // pred_region
      %s82 = ssub.s32 256, 256
      %83 = vsyncadd [#allocation4], %s82
      %s84 = sshll.u32 [#allocation5], 4
      %s85 = int_to_ptr.vmem [resolvable:$true] %s84
      %90 = dma.vmem_to_hbm [thread:$0]  %s85, 256, %s3, [#allocation4], 128, 128, 8
    $region21: #{tpu_custom_call.1} parent=1 // pred_fallthru
      _
    // Predicated region
    $region22: #{tpu_custom_call.1} parent=1 // pred_check
      _
    $region23: #{tpu_custom_call.1} parent=1 // pred_check_branch
      %92 = sbr.rel (0) target = $region25
    $region24: #{tpu_custom_call.1} parent=1 // pred_region
      %93 = dma.done [#allocation4], 256
    $region25: #{tpu_custom_call.1} parent=1 // pred_fallthru
      _
    %94 = vsyncpa [#allocation3], 1
    %95 = vsyncpa [#allocation4], 1

</llo_original>
